<compile_context>
chip_gen: v7x
topology: tpu7x:2x2x1
jax: 0.10.0
libtpu: 0.0.40
codegen_flags: <defaults>
</compile_context>

<pallas_src>
import functools

import jax
import jax.numpy as jnp
from jax import lax
from jax.experimental import pallas as pl
from jax.experimental.pallas import tpu as pltpu


def _round_up(x, m):
    return (x + m - 1) // m * m


def _largest_divisor_tile(padded, cap):
    """Largest multiple of 128 <= cap that exactly divides `padded`.

    `padded` is a multiple of 128, so this terminates at >= 128."""
    t = min(cap - cap % 128, padded)
    while padded % t:
        t -= 128
    return t


_TM_CAP = 512
_TN_CAP = 512
_TK_CAP = 1024


def _choose_k(K):
    """K tile / padded K. Single fat k-step whenever it fits (<=1024)."""
    Kp = _round_up(K, 128)
    if Kp <= _TK_CAP:
        return Kp, Kp
    return _largest_divisor_tile(Kp, _TK_CAP), Kp


def _choose_n(N):
    """N tile / padded N. gn == 1 for every real ResNet width (Cout <= 512)."""
    Np = _round_up(N, 128)
    if Np <= _TN_CAP:
        return Np, Np
    return _largest_divisor_tile(Np, _TN_CAP), Np


def _choose_m(M):
    """M tile / padded M. Pad M up to a multiple of the tile (zero rows are
    exact for both the GEMM and the fused stats)."""
    Mp = _round_up(M, 128)
    if Mp <= _TM_CAP:
        return Mp, Mp
    return _TM_CAP, _round_up(Mp, _TM_CAP)


# ----------------------------- Pallas kernels ------------------------------

def _matmul_stats_kernel(a_ref, b_ref, o_ref, sum_ref, sq_ref, acc_ref):
    """Tiled GEMM (bf16 in, f32 acc, bf16 out) with per-column sum /
    sum-of-squares emitted in f32 in the last-k epilogue (per (i, j) block;
    the cross-i combine is a tiny JAX op outside)."""
    k = pl.program_id(2)

    @pl.when(k == 0)
    def _():
        acc_ref[...] = jnp.zeros_like(acc_ref)

    acc_ref[...] += jnp.dot(a_ref[...], b_ref[...],
                            preferred_element_type=jnp.float32)

    @pl.when(k == pl.num_programs(2) - 1)
    def _():
        acc = acc_ref[...]
        o_ref[...] = acc.astype(o_ref.dtype)
        sum_ref[...] = jnp.sum(acc, axis=0, keepdims=True)[None]
        sq_ref[...] = jnp.sum(acc * acc, axis=0, keepdims=True)[None]


def conv_gemm_with_stats(a_bf16, b_bf16):
    """a: (M, K) bf16, b: (K, N) bf16.

    Returns (y_pad (Mp, Np) bf16, mean (Np,) f32, var (Np,) f32) where
    mean/var are the batch statistics over the M real rows (biased variance).
    Padded rows/cols of a/b are zero, so the per-block sums are exact."""
    M, K = a_bf16.shape
    _, N = b_bf16.shape

    TK, Kp = _choose_k(K)
    TN, Np = _choose_n(N)
    TM, Mp = _choose_m(M)
    # v7x has 2 TensorCores: make sure a 'parallel' grid axis has >= 2 blocks
    # whenever the problem allows it.
    if (Mp // TM) * (Np // TN) == 1 and TM % 256 == 0:
        TM //= 2
    gm, gn, gk = Mp // TM, Np // TN, Kp // TK

    a_p = jnp.pad(a_bf16, ((0, Mp - M), (0, Kp - K)))
    b_p = jnp.pad(b_bf16, ((0, Kp - K), (0, Np - N)))

    y, s_part, sq_part = pl.pallas_call(
        _matmul_stats_kernel,
        out_shape=(jax.ShapeDtypeStruct((Mp, Np), jnp.bfloat16),
                   jax.ShapeDtypeStruct((gm, 1, Np), jnp.float32),
                   jax.ShapeDtypeStruct((gm, 1, Np), jnp.float32)),
        grid_spec=pltpu.PrefetchScalarGridSpec(
            num_scalar_prefetch=0,
            grid=(gm, gn, gk),
            in_specs=[pl.BlockSpec((TM, TK), lambda i, j, k: (i, k)),
                      pl.BlockSpec((TK, TN), lambda i, j, k: (k, j))],
            out_specs=(pl.BlockSpec((TM, TN), lambda i, j, k: (i, j)),
                       pl.BlockSpec((1, 1, TN), lambda i, j, k: (i, 0, j)),
                       pl.BlockSpec((1, 1, TN), lambda i, j, k: (i, 0, j))),
            scratch_shapes=[pltpu.VMEM((TM, TN), jnp.float32)]),
        compiler_params=pltpu.CompilerParams(
            dimension_semantics=("parallel", "parallel", "arbitrary")),
        cost_estimate=pl.CostEstimate(
            flops=2 * Mp * Kp * Np,
            transcendentals=0,
            bytes_accessed=2 * (Mp * Kp * gn + Kp * Np * gm + Mp * Np)),
    )(a_p, b_p)

    # Chan-style per-row-block combine -> exact batch mean and a numerically
    # safer biased variance than a single global E[x^2] - E[x]^2.
    # Padded rows are zero and contribute nothing to the per-block sums; the
    # last block always contains at least one real row by construction.
    rows = jnp.clip(M - TM * jnp.arange(gm), 1, TM).astype(jnp.float32)[:, None]
    s_b = s_part[:, 0, :]
    sq_b = sq_part[:, 0, :]
    mean_b = s_b / rows
    m2_b = jnp.maximum(sq_b - rows * mean_b * mean_b, 0.0)
    mean = jnp.sum(s_b, axis=0) / M
    var = (jnp.sum(m2_b, axis=0) +
           jnp.sum(rows * (mean_b - mean[None, :]) ** 2, axis=0)) / M
    var = jnp.maximum(var, 0.0)
    return y, mean, var


def _affine_relu_kernel(y_ref, scale_ref, bias_ref, o_ref, *, relu):
    z = y_ref[...].astype(jnp.float32) * scale_ref[...] + bias_ref[...]
    if relu:
        z = jnp.maximum(z, 0.0)
    o_ref[...] = z.astype(o_ref.dtype)


def _affine_res_relu_kernel(y_ref, scale_ref, bias_ref, res_ref, o_ref, *, relu):
    z = (y_ref[...].astype(jnp.float32) * scale_ref[...] + bias_ref[...]
         + res_ref[...].astype(jnp.float32))
    if relu:
        z = jnp.maximum(z, 0.0)
    o_ref[...] = z.astype(o_ref.dtype)


def pallas_affine_act(y_pad, scale, bias, res_pad=None, relu=True,
                      out_dtype=jnp.bfloat16):
    """BN affine (+ optional residual) + ReLU, streamed over lane-dense row
    blocks. y/res are bf16 streams, compute in f32, output dtype selectable."""
    Mp, Cp = y_pad.shape
    RB = _largest_divisor_tile(Mp, 512)
    if Mp // RB == 1 and RB % 256 == 0:
        RB //= 2          # >= 2 parallel blocks so both v7x TensorCores help
    row_spec = pl.BlockSpec((RB, Cp), lambda i: (i, 0))
    vec_spec = pl.BlockSpec((1, Cp), lambda i: (0, 0))
    if res_pad is None:
        kernel = functools.partial(_affine_relu_kernel, relu=relu)
        in_specs = [row_spec, vec_spec, vec_spec]
        args = (y_pad, scale, bias)
    else:
        kernel = functools.partial(_affine_res_relu_kernel, relu=relu)
        in_specs = [row_spec, vec_spec, vec_spec, row_spec]
        args = (y_pad, scale, bias, res_pad)
    return pl.pallas_call(
        kernel,
        out_shape=jax.ShapeDtypeStruct((Mp, Cp), out_dtype),
        grid_spec=pltpu.PrefetchScalarGridSpec(
            num_scalar_prefetch=0,
            grid=(Mp // RB,),
            in_specs=in_specs,
            out_specs=row_spec),
        compiler_params=pltpu.CompilerParams(
            dimension_semantics=("parallel",)),
    )(*args)


# ------------------------------- JAX glue ----------------------------------

def im2col_3x3(x_nhwc, stride):
    """3x3, pad=1 patches, emitted directly in bf16 for the MXU.

    Returns (N*Ho*Wo, 9*C) bf16 with (kh, kw, C) column order.
    TODO(synk): fold these taps into the GEMM grid instead of materializing
    the 9x patches buffer in HBM."""
    N, H, W, C = x_nhwc.shape
    xp = jnp.pad(x_nhwc.astype(jnp.bfloat16), ((0, 0), (1, 1), (1, 1), (0, 0)))
    Ho = (H + 2 - 3) // stride + 1
    Wo = (W + 2 - 3) // stride + 1
    cols = []
    for dy in range(3):
        for dx in range(3):
            cols.append(xp[:, dy:dy + stride * (Ho - 1) + 1:stride,
                           dx:dx + stride * (Wo - 1) + 1:stride, :])
    patches = jnp.concatenate(cols, axis=-1)          # (N, Ho, Wo, 9*C) bf16
    return patches.reshape(N * Ho * Wo, 9 * C), Ho, Wo


def avgpool2(x_nhwc):
    # nn.AvgPool2d(2): 2x2 window, stride 2
    N, H, W, C = x_nhwc.shape
    assert H % 2 == 0 and W % 2 == 0, "AvgPool2d(2) shortcut needs even H, W"
    return x_nhwc.reshape(N, H // 2, 2, W // 2, 2, C).mean(axis=(2, 4))


def conv_bn_act(x_nhwc, w_oihw, gamma, beta, stride, residual_nhwc=None,
                relu=True, eps=1e-5, out_dtype=jnp.bfloat16):
    """conv3x3(no bias) -> BatchNorm (training-mode batch stats) -> (+res) -> ReLU."""
    N = x_nhwc.shape[0]
    cout = w_oihw.shape[0]
    patches, Ho, Wo = im2col_3x3(x_nhwc, stride)                    # (M, 9*Cin) bf16
    w_mat = jnp.transpose(w_oihw, (2, 3, 1, 0)).reshape(-1, cout)   # (9*Cin, Cout)
    w_mat = w_mat.astype(jnp.bfloat16)

    M = patches.shape[0]
    # GEMM + fused per-channel batch mean / biased variance.
    y_pad, mean, var = conv_gemm_with_stats(patches, w_mat)
    Mp, Cp = y_pad.shape

    gamma_p = jnp.pad(gamma, (0, Cp - cout))
    beta_p = jnp.pad(beta, (0, Cp - cout))
    scale_vec = gamma_p * lax.rsqrt(var + eps)        # padded channels: gamma=0 -> scale=0
    bias_vec = beta_p - mean * scale_vec
    scale = scale_vec.reshape(1, Cp).astype(jnp.float32)
    bias = bias_vec.reshape(1, Cp).astype(jnp.float32)

    if residual_nhwc is None:
        res_pad = None                                # no zero tensor streamed
    else:
        cres = residual_nhwc.shape[-1]                # may be < cout (padding shortcut)
        res_flat = residual_nhwc.reshape(M, cres).astype(jnp.bfloat16)
        # channels [cres, Cp) get zeros -> covers the torch.cat([sc, zeros]) half
        # TODO(synk): add the residual only to the first cres lanes in-kernel
        # instead of streaming the padded zero half.
        res_pad = jnp.pad(res_flat, ((0, Mp - M), (0, Cp - cres)))

    out_pad = pallas_affine_act(y_pad, scale, bias, res_pad, relu=relu,
                                out_dtype=out_dtype)
    return out_pad[:M, :cout].reshape(N, Ho, Wo, cout)


def basic_block_forward(x_nchw, params, in_planes, planes, stride):
    """Pallas implementation of BasicBlock.forward (expansion = 1)."""
    x = jnp.transpose(x_nchw, (0, 2, 3, 1)).astype(jnp.float32)  # NCHW -> NHWC

    # out = relu(bn1(conv1(x)))  -- intermediate stays bf16 (next conv reads bf16)
    out = conv_bn_act(x, params["w1"], params["g1"], params["b1"],
                      stride, residual_nhwc=None, relu=True,
                      out_dtype=jnp.bfloat16)

    # shortcut branch
    shortcut_is_pool = (stride != 1) or (in_planes != planes)
    is_padding = (in_planes != planes)
    if is_padding:
        assert planes == 2 * in_planes, "padding shortcut needs planes == 2*in_planes"
        res = avgpool2(x)             # zero channel half is added via padding in conv_bn_act
    elif shortcut_is_pool:
        res = avgpool2(x)
    else:
        res = x

    # out = relu(bn2(conv2(out)) + shortcut)   (.clone().detach() has no forward effect)
    out = conv_bn_act(out, params["w2"], params["g2"], params["b2"],
                      1, residual_nhwc=res, relu=True, out_dtype=jnp.float32)

    return jnp.transpose(out, (0, 3, 1, 2))                # NHWC -> NCHW


# ----------------------------- pure-JAX reference ---------------------------

def _ref_bn_train(y_nchw, gamma, beta, eps=1e-5):
    mean = y_nchw.mean(axis=(0, 2, 3), keepdims=True)
    var = y_nchw.var(axis=(0, 2, 3), keepdims=True)  # biased
    g = gamma.reshape(1, -1, 1, 1)
    b = beta.reshape(1, -1, 1, 1)
    return (y_nchw - mean) / jnp.sqrt(var + eps) * g + b


def _ref_conv(x_nchw, w, stride):
    return lax.conv_general_dilated(
        x_nchw, w, window_strides=(stride, stride), padding=[(1, 1), (1, 1)],
        dimension_numbers=("NCHW", "OIHW", "NCHW"))


def basic_block_reference(x_nchw, params, in_planes, planes, stride):
    out = jax.nn.relu(_ref_bn_train(_ref_conv(x_nchw, params["w1"], stride),
                                    params["g1"], params["b1"]))
    out = _ref_bn_train(_ref_conv(out, params["w2"], 1), params["g2"], params["b2"])
    shortcut_is_pool = (stride != 1) or (in_planes != planes)
    is_padding = (in_planes != planes)

    def pool(x):
        N, C, H, W = x.shape
        return x.reshape(N, C, H // 2, 2, W // 2, 2).mean(axis=(3, 5))

    if is_padding:
        sc = pool(x_nchw)
        res = jnp.concatenate([sc, jnp.zeros_like(sc)], axis=1)
    elif shortcut_is_pool:
        res = pool(x_nchw)
    else:
        res = x_nchw
    return jax.nn.relu(out + res)


# --------------------------------- main -------------------------------------

def make_params(key, in_planes, planes):
    k1, k2, k3, k4, k5, k6 = jax.random.split(key, 6)
    return {
        "w1": 0.1 * jax.random.normal(k1, (planes, in_planes, 3, 3), jnp.float32),
        "g1": 1.0 + 0.1 * jax.random.normal(k2, (planes,), jnp.float32),
        "b1": 0.1 * jax.random.normal(k3, (planes,), jnp.float32),
        "w2": 0.1 * jax.random.normal(k4, (planes, planes, 3, 3), jnp.float32),
        "g2": 1.0 + 0.1 * jax.random.normal(k5, (planes,), jnp.float32),
        "b2": 0.1 * jax.random.normal(k6, (planes,), jnp.float32),
    }


def _check(out, ref):
    # bf16 MXU inputs + bf16 intermediates: loose per-element bound + tight
    # aggregate bound.
    err = jnp.abs(out - ref)
    assert jnp.allclose(out, ref, rtol=5e-2, atol=5e-2), float(err.max())
    assert float(err.mean()) < 1e-2, float(err.mean())


if __name__ == "__main__":
    key = jax.random.PRNGKey(0)
    kx, kp1, kp2 = jax.random.split(key, 3)

    # Case 1: identity shortcut (stride=1, in_planes == planes)
    x1 = jax.random.normal(kx, (2, 4, 16, 16), jnp.float32)
    p1 = make_params(kp1, in_planes=4, planes=4)
    out1 = basic_block_forward(x1, p1, in_planes=4, planes=4, stride=1)
    out1 = jax.block_until_ready(out1)
    ref1 = basic_block_reference(x1, p1, in_planes=4, planes=4, stride=1)
    assert out1.shape == (2, 4, 16, 16)
    _check(out1, ref1)

    # Case 2: downsampling + channel-padding shortcut (stride=2, planes = 2*in_planes)
    p2 = make_params(kp2, in_planes=4, planes=8)
    out2 = basic_block_forward(x1, p2, in_planes=4, planes=8, stride=2)
    out2 = jax.block_until_ready(out2)
    ref2 = basic_block_reference(x1, p2, in_planes=4, planes=8, stride=2)
    assert out2.shape == (2, 8, 8, 8)
    _check(out2, ref2)

    print("KERNEL_OK")
</pallas_src>

<mosaic_0001>
module attributes {stable_mosaic.version = 11 : i64} {
  func.func @_matmul_stats_kernel(%arg0: i32, %arg1: i32, %arg2: i32, %arg3: memref<256x128xbf16, #tpu.memory_space<vmem>>, %arg4: memref<128x128xbf16, #tpu.memory_space<vmem>>, %arg5: memref<256x128xbf16, #tpu.memory_space<vmem>>, %arg6: memref<1x1x128xf32, #tpu.memory_space<vmem>>, %arg7: memref<1x1x128xf32, #tpu.memory_space<vmem>>, %arg8: memref<256x128xf32, #tpu.memory_space<vmem>>) attributes {dimension_semantics = [#tpu.dimension_semantics<parallel>, #tpu.dimension_semantics<parallel>, #tpu.dimension_semantics<arbitrary>], iteration_bounds = array<i64: 2, 1, 1>, scalar_prefetch = 0 : i64, scratch_operands = 1 : i64, tpu.core_type = #tpu.core_type<tc>, window_params = [{transform_indices = @transform_0, window_bounds = array<i64: 256, 128>}, {transform_indices = @transform_1, window_bounds = array<i64: 128, 128>}, {transform_indices = @transform_2, window_bounds = array<i64: 256, 128>}, {transform_indices = @transform_3, window_bounds = array<i64: 1, 1, 128>}, {transform_indices = @transform_4, window_bounds = array<i64: 1, 1, 128>}]} {
    %c0_i32 = arith.constant 0 : i32
    %0 = arith.cmpi eq, %arg2, %c0_i32 : i32
    %1 = arith.extui %0 : i1 to i32
    %c0_i32_0 = arith.constant 0 : i32
    %2 = arith.cmpi ne, %1, %c0_i32_0 : i32
    scf.if %2 {
      %cst_10 = arith.constant 0.000000e+00 : f32
      %12 = vector.broadcast %cst_10 : f32 to vector<256x128xf32>
      %c0_11 = arith.constant 0 : index
      %c0_12 = arith.constant 0 : index
      %13 = vector.load %arg8[%c0_11, %c0_12] : memref<256x128xf32, #tpu.memory_space<vmem>>, vector<256x128xf32>
      tpu.vector_store %arg8[%c0_11, %c0_12], %12 {strides = array<i32>} : memref<256x128xf32, #tpu.memory_space<vmem>>, vector<256x128xf32>,
    } else {
    }
    %c0 = arith.constant 0 : index
    %c0_1 = arith.constant 0 : index
    %3 = vector.load %arg8[%c0, %c0_1] : memref<256x128xf32, #tpu.memory_space<vmem>>, vector<256x128xf32>
    %c0_2 = arith.constant 0 : index
    %c0_3 = arith.constant 0 : index
    %4 = vector.load %arg3[%c0_2, %c0_3] : memref<256x128xbf16, #tpu.memory_space<vmem>>, vector<256x128xbf16>
    %c0_4 = arith.constant 0 : index
    %c0_5 = arith.constant 0 : index
    %5 = vector.load %arg4[%c0_4, %c0_5] : memref<128x128xbf16, #tpu.memory_space<vmem>>, vector<128x128xbf16>
    %cst = arith.constant dense<0.000000e+00> : vector<256x128xf32>
    %6 = tpu.matmul %4, %5, %cst {dimension_numbers = #tpu.dot_dimension_numbers<[1], [0], [0], [1], [0, 0, 1, 1], [], []>} : vector<256x128xbf16>, vector<128x128xbf16>, vector<256x128xf32> -> vector<256x128xf32>
    %7 = arith.addf %3, %6 : vector<256x128xf32>
    %c0_6 = arith.constant 0 : index
    %c0_7 = arith.constant 0 : index
    %8 = vector.load %arg8[%c0_6, %c0_7] : memref<256x128xf32, #tpu.memory_space<vmem>>, vector<256x128xf32>
    tpu.vector_store %arg8[%c0_6, %c0_7], %7 {strides = array<i32>} : memref<256x128xf32, #tpu.memory_space<vmem>>, vector<256x128xf32>,
    %c0_i32_8 = arith.constant 0 : i32
    %9 = arith.cmpi eq, %arg2, %c0_i32_8 : i32
    %10 = arith.extui %9 : i1 to i32
    %c0_i32_9 = arith.constant 0 : i32
    %11 = arith.cmpi ne, %10, %c0_i32_9 : i32
    scf.if %11 {
      %c0_10 = arith.constant 0 : index
      %c0_11 = arith.constant 0 : index
      %12 = vector.load %arg8[%c0_10, %c0_11] : memref<256x128xf32, #tpu.memory_space<vmem>>, vector<256x128xf32>
      %13 = arith.truncf %12 : vector<256x128xf32> to vector<256x128xbf16>
      %c0_12 = arith.constant 0 : index
      %c0_13 = arith.constant 0 : index
      %14 = vector.load %arg5[%c0_12, %c0_13] : memref<256x128xbf16, #tpu.memory_space<vmem>>, vector<256x128xbf16>
      tpu.vector_store %arg5[%c0_12, %c0_13], %13 {strides = array<i32>} : memref<256x128xbf16, #tpu.memory_space<vmem>>, vector<256x128xbf16>,
      %cst_14 = arith.constant dense<0.000000e+00> : vector<128xf32>
      %15 = vector.multi_reduction <add>, %12, %cst_14 [0] : vector<256x128xf32> to vector<128xf32>
      %16 = vector.shape_cast %15 : vector<128xf32> to vector<1x128xf32>
      %17 = vector.shape_cast %16 : vector<1x128xf32> to vector<1x1x128xf32>
      %c0_15 = arith.constant 0 : index
      %c0_16 = arith.constant 0 : index
      %c0_17 = arith.constant 0 : index
      %18 = vector.load %arg6[%c0_15, %c0_16, %c0_17] : memref<1x1x128xf32, #tpu.memory_space<vmem>>, vector<1x1x128xf32>
      tpu.vector_store %arg6[%c0_15, %c0_16, %c0_17], %17 {strides = array<i32>} : memref<1x1x128xf32, #tpu.memory_space<vmem>>, vector<1x1x128xf32>,
      %19 = arith.mulf %12, %12 : vector<256x128xf32>
      %cst_18 = arith.constant dense<0.000000e+00> : vector<128xf32>
      %20 = vector.multi_reduction <add>, %19, %cst_18 [0] : vector<256x128xf32> to vector<128xf32>
      %21 = vector.shape_cast %20 : vector<128xf32> to vector<1x128xf32>
      %22 = vector.shape_cast %21 : vector<1x128xf32> to vector<1x1x128xf32>
      %c0_19 = arith.constant 0 : index
      %c0_20 = arith.constant 0 : index
      %c0_21 = arith.constant 0 : index
      %23 = vector.load %arg7[%c0_19, %c0_20, %c0_21] : memref<1x1x128xf32, #tpu.memory_space<vmem>>, vector<1x1x128xf32>
      tpu.vector_store %arg7[%c0_19, %c0_20, %c0_21], %22 {strides = array<i32>} : memref<1x1x128xf32, #tpu.memory_space<vmem>>, vector<1x1x128xf32>,
    } else {
    }
    return
  }
  func.func @transform_0(%arg0: i32, %arg1: i32, %arg2: i32) -> (i32, i32) {
    %c0_i32 = arith.constant 0 : i32
    return %arg0, %arg2 : i32, i32
  }
  func.func @transform_1(%arg0: i32, %arg1: i32, %arg2: i32) -> (i32, i32) {
    %c0_i32 = arith.constant 0 : i32
    return %arg2, %arg1 : i32, i32
  }
  func.func @transform_2(%arg0: i32, %arg1: i32, %arg2: i32) -> (i32, i32) {
    %c0_i32 = arith.constant 0 : i32
    return %arg0, %arg1 : i32, i32
  }
  func.func @transform_3(%arg0: i32, %arg1: i32, %arg2: i32) -> (i32, i32, i32) {
    %c0_i32 = arith.constant 0 : i32
    %c0_i32_0 = arith.constant 0 : i32
    return %arg0, %c0_i32, %arg1 : i32, i32, i32
  }
  func.func @transform_4(%arg0: i32, %arg1: i32, %arg2: i32) -> (i32, i32, i32) {
    %c0_i32 = arith.constant 0 : i32
    %c0_i32_0 = arith.constant 0 : i32
    return %arg0, %c0_i32, %arg1 : i32, i32, i32
  }
}

</mosaic_0001>

<llo_original>
// kernel: tpu_custom_call.1
$region0: #{tpu_custom_call.1}
  #allocation0 [shape = 'u32[]', space=smem, size = 0x4, offset = 0x4, fixed_abs, tag = 'smem constant byte address 0x4 - core index']
  #allocation1 [shape = 'u32[144,128]{1,0:T(1,128)}', space=vmem, size = 0x12000, scoped, tag = 'internal scratch']
  #allocation2 [shape = 'f32[256,128]{1,0:T(8,128)}', space=vmem, size = 0x20000, scoped, tag = 'scratch operand']
  %s0 = inlined_call_operand.hbm [shape: bf16[512,128], index: 0, kind: input, shape index: {}]
  %s1 = inlined_call_operand.hbm [shape: bf16[128,128], index: 1, kind: input, shape index: {}]
  %s2 = inlined_call_operand.hbm [shape: bf16[512,128], index: 2, kind: output, shape index: {0}]
  %s3 = inlined_call_operand.hbm [shape: f32[2,1,128], index: 3, kind: output, shape index: {1}]
  %s4 = inlined_call_operand.hbm [shape: f32[2,1,128], index: 4, kind: output, shape index: {2}]
  %5 = xla_tuple %s2, %s3, %s4
  %s6 = sld [smem:[#allocation0]]
  $region73: #{tpu_custom_call.1} parent=0
    _
  %s8 = ssub.s32 1, %s6
  %s9 = scalar_select 0, %s8, %s6
  $region1: #{tpu_custom_call.1} parent=0
    #allocation3 [shape = 'u8[131072]{0}', space=vmem, size = 0x20000, scoped, tag = 'input window, operand 0']
    #allocation4 [shape = 's32[2]{0}', space=sflag, size = 0x8, scoped, tag = 'scoped memory for tpu_custom_call.1']
    #allocation5 [shape = 's32[2]{0}', space=sflag, size = 0x8, scoped, tag = 'scoped memory for tpu_custom_call.1']
    #allocation6 [shape = 'u8[32768]{0}', space=vmem, size = 0x8000, scoped, tag = 'input window, operand 1, single buffered']
    #allocation7 [shape = 's32[1]{0}', space=sflag, size = 0x4, scoped, tag = 'scoped memory for tpu_custom_call.1']
    #allocation8 [shape = 'u8[131072]{0}', space=vmem, size = 0x20000, scoped, tag = 'output window, operand 0']
    #allocation9 [shape = 'u8[1024]{0}', space=vmem, size = 0x400, scoped, tag = 'output window, operand 1']
    #allocation10 [shape = 's32[2]{0}', space=sflag, size = 0x8, scoped, tag = 'scoped memory for tpu_custom_call.1']
    #allocation11 [shape = 'u8[1024]{0}', space=vmem, size = 0x400, scoped, tag = 'output window, operand 2']
    %10 = vsyncpa [#allocation4], 0
    %s11 = scalar_lea.sflag [#allocation4], 1
    %12 = vsyncpa %s11, 0
    %13 = vsyncpa [#allocation7], 0
    %14 = vsyncpa [#allocation5], 0
    %s15 = scalar_lea.sflag [#allocation5], 1
    %16 = vsyncpa %s15, 0
    %17 = vsyncpa [#allocation10], 0
    %s18 = scalar_lea.sflag [#allocation10], 1
    %19 = vsyncpa %s18, 0
    loop: start=0, step=1, limit=4
    $region2: #{tpu_custom_call.1} parent=1 // loop_pre_header
      _
    $region3: #{tpu_custom_call.1} parent=1 // loop_header
      %s21 = sphi 0, %s25
      %p22 = scmp.ge.s32.totalorder %s21, 4
      %s28 = sphi 0, %s47
      %s29 = sphi 0, %s43
      %s30 = sphi 0, %s39
      %s31 = sphi 0, %s28
      %s32 = sphi 0, %s29
      %s33 = sphi 0, %s30
      %s34 = sphi 0, %s31
      %s35 = sphi 0, %s32
      %s36 = sphi 0, %s33
      %s52 = sphi 0, %s54
      %s55 = sphi 0, %s52
      %s56 = sphi 0, %s55
      %s72 = sphi 0, %s56
      %s80 = sphi 0, %s82
      %s83 = sphi 0, %s80
      %s84 = sphi 0, %s83
      %s100 = sphi 0, %s84
      %s108 = sphi 0, %s110
      %s111 = sphi 0, %s108
      %s112 = sphi 0, %s111
      %s128 = sphi 0, %s112
      %s136 = sphi 0, %s138
      %s139 = sphi 0, %s136
      %s140 = sphi 0, %s139
      %s156 = sphi 0, %s140
      %s164 = sphi 0, %s166
      %s167 = sphi 0, %s164
      %s168 = sphi 0, %s167
      %s184 = sphi 0, %s168
    $region4: #{tpu_custom_call.1} parent=1 // loop_header_branch
      %24 = sbr.rel (%p22) target = $region8
    $region5: #{tpu_custom_call.1} parent=1 // loop_body
      %s26 = ssub.s32 %s21, 1
      %s27 = ssub.s32 %s21, 2
      %s37 = sadd.s32 1, %s30
      %p38 = scmp.ge.s32.totalorder %s37, 1
      %s39 = scalar_select %p38, 0, %s37
      %s40 = sadd.s32 1, %s29
      %s41 = scalar_select %p38, %s40, %s29
      %p42 = scmp.ge.s32.totalorder %s41, 1
      %s43 = scalar_select %p42, 0, %s41
      %s44 = sadd.s32 1, %s28
      %s45 = scalar_select %p42, %s44, %s28
      %p46 = scmp.ge.s32.totalorder %s45, 2
      %s47 = scalar_select %p46, 0, %s45
      %s48 = ssub.s32 %s28, %s47
      %s49 = ssub.s32 %s30, %s39
      %s50 = sor.u32 %s48, %s49
      %p51 = scmp.eq.s32.totalorder %s50, 0
      %s53 = sadd.s32 %s52, 1
      %s54 = scalar_select %p51, %s52, %s53
      %p57 = pneg %p51
      %p58 = scmp.eq.s32.totalorder %s21, 1
      %p59 = por %p57, %p58
      %p60 = scmp.ne.s32.totalorder %s52, %s55
      %p61 = scmp.eq.s32.totalorder %s21, 0
      %p62 = por %p60, %p61
      %p63 = scmp.ne.s32.totalorder %s52, %s55
      %p64 = scmp.eq.s32.totalorder %s26, 1
      %p65 = por %p63, %p64
      %p66 = scmp.ne.s32.totalorder %s55, %s56
      %p67 = scmp.eq.s32.totalorder %s26, 0
      %p68 = por %p66, %p67
      %p69 = scmp.ne.s32.totalorder %s55, %s56
      %p70 = scmp.eq.s32.totalorder %s27, 1
      %p71 = por %p69, %p70
      %p73 = scmp.ne.s32.totalorder %s56, %s72
      %p74 = scmp.eq.s32.totalorder %s27, 0
      %p75 = por %p73, %p74
      %s76 = ssub.s32 %s30, %s39
      %s77 = ssub.s32 %s29, %s43
      %s78 = sor.u32 %s76, %s77
      %p79 = scmp.eq.s32.totalorder %s78, 0
      %s81 = sadd.s32 %s80, 1
      %s82 = scalar_select %p79, %s80, %s81
      %p85 = pneg %p79
      %p86 = scmp.eq.s32.totalorder %s21, 1
      %p87 = por %p85, %p86
      %p88 = scmp.ne.s32.totalorder %s80, %s83
      %p89 = scmp.eq.s32.totalorder %s21, 0
      %p90 = por %p88, %p89
      %p91 = scmp.ne.s32.totalorder %s80, %s83
      %p92 = scmp.eq.s32.totalorder %s26, 1
      %p93 = por %p91, %p92
      %p94 = scmp.ne.s32.totalorder %s83, %s84
      %p95 = scmp.eq.s32.totalorder %s26, 0
      %p96 = por %p94, %p95
      %p97 = scmp.ne.s32.totalorder %s83, %s84
      %p98 = scmp.eq.s32.totalorder %s27, 1
      %p99 = por %p97, %p98
      %p101 = scmp.ne.s32.totalorder %s84, %s100
      %p102 = scmp.eq.s32.totalorder %s27, 0
      %p103 = por %p101, %p102
      %s104 = ssub.s32 %s28, %s47
      %s105 = ssub.s32 %s29, %s43
      %s106 = sor.u32 %s104, %s105
      %p107 = scmp.eq.s32.totalorder %s106, 0
      %s109 = sadd.s32 %s108, 1
      %s110 = scalar_select %p107, %s108, %s109
      %p113 = pneg %p107
      %p114 = scmp.eq.s32.totalorder %s21, 1
      %p115 = por %p113, %p114
      %p116 = scmp.ne.s32.totalorder %s108, %s111
      %p117 = scmp.eq.s32.totalorder %s21, 0
      %p118 = por %p116, %p117
      %p119 = scmp.ne.s32.totalorder %s108, %s111
      %p120 = scmp.eq.s32.totalorder %s26, 1
      %p121 = por %p119, %p120
      %p122 = scmp.ne.s32.totalorder %s111, %s112
      %p123 = scmp.eq.s32.totalorder %s26, 0
      %p124 = por %p122, %p123
      %p125 = scmp.ne.s32.totalorder %s111, %s112
      %p126 = scmp.eq.s32.totalorder %s27, 1
      %p127 = por %p125, %p126
      %p129 = scmp.ne.s32.totalorder %s112, %s128
      %p130 = scmp.eq.s32.totalorder %s27, 0
      %p131 = por %p129, %p130
      %s132 = ssub.s32 %s28, %s47
      %s133 = ssub.s32 %s29, %s43
      %s134 = sor.u32 %s132, %s133
      %p135 = scmp.eq.s32.totalorder %s134, 0
      %s137 = sadd.s32 %s136, 1
      %s138 = scalar_select %p135, %s136, %s137
      %p141 = pneg %p135
      %p142 = scmp.eq.s32.totalorder %s21, 1
      %p143 = por %p141, %p142
      %p144 = scmp.ne.s32.totalorder %s136, %s139
      %p145 = scmp.eq.s32.totalorder %s21, 0
      %p146 = por %p144, %p145
      %p147 = scmp.ne.s32.totalorder %s136, %s139
      %p148 = scmp.eq.s32.totalorder %s26, 1
      %p149 = por %p147, %p148
      %p150 = scmp.ne.s32.totalorder %s139, %s140
      %p151 = scmp.eq.s32.totalorder %s26, 0
      %p152 = por %p150, %p151
      %p153 = scmp.ne.s32.totalorder %s139, %s140
      %p154 = scmp.eq.s32.totalorder %s27, 1
      %p155 = por %p153, %p154
      %p157 = scmp.ne.s32.totalorder %s140, %s156
      %p158 = scmp.eq.s32.totalorder %s27, 0
      %p159 = por %p157, %p158
      %s160 = ssub.s32 %s28, %s47
      %s161 = ssub.s32 %s29, %s43
      %s162 = sor.u32 %s160, %s161
      %p163 = scmp.eq.s32.totalorder %s162, 0
      %s165 = sadd.s32 %s164, 1
      %s166 = scalar_select %p163, %s164, %s165
      %p169 = pneg %p163
      %p170 = scmp.eq.s32.totalorder %s21, 1
      %p171 = por %p169, %p170
      %p172 = scmp.ne.s32.totalorder %s164, %s167
      %p173 = scmp.eq.s32.totalorder %s21, 0
      %p174 = por %p172, %p173
      %p175 = scmp.ne.s32.totalorder %s164, %s167
      %p176 = scmp.eq.s32.totalorder %s26, 1
      %p177 = por %p175, %p176
      %p178 = scmp.ne.s32.totalorder %s167, %s168
      %p179 = scmp.eq.s32.totalorder %s26, 0
      %p180 = por %p178, %p179
      %p181 = scmp.ne.s32.totalorder %s167, %s168
      %p182 = scmp.eq.s32.totalorder %s27, 1
      %p183 = por %p181, %p182
      %p185 = scmp.ne.s32.totalorder %s168, %s184
      %p186 = scmp.eq.s32.totalorder %s27, 0
      %p187 = por %p185, %p186
      %p188 = scmp.le.s32.totalorder 1, %s21
      %p189 = scmp.lt.s32.totalorder %s21, 3
      %p190 = pnand %p188, %p189
      %p191 = pneg %p190
      // Predicated region
      $region9: #{tpu_custom_call.1} parent=5 // pred_check
        _
      $region10: #{tpu_custom_call.1} parent=5 // pred_check_branch
        %193 = sbr.rel (%p190) target = $region12
      $region11: #{tpu_custom_call.1} parent=5 // pred_region
        %s194 = ssub.s32 %s21, 1
        // Predicated region
        $region13: #{tpu_custom_call.1} parent=11 // pred_check
          %p195 = pneg %p96
        $region14: #{tpu_custom_call.1} parent=11 // pred_check_branch
          %197 = sbr.rel (%p195) target = $region16
        $region15: #{tpu_custom_call.1} parent=11 // pred_region
          %s198 = smul.u32 16, %s33
          %s200 = ssub.s32 1024, 1024
          %201 = vsyncadd [#allocation7], %s200
          %s202 = sadd.s32 %s32, %s198
          %s203 = smul.addr %s202, 64
          %s204 = scalar_lea.hbm %s1, %s203
          %s205 = sshll.u32 [#allocation6], 4
          %s206 = int_to_ptr.vmem [resolvable:$true] %s205
          %211 = dma.hbm_to_vmem [thread:$0]  %s204, 1024, %s206, [#allocation7], 64, 64, 4
        $region16: #{tpu_custom_call.1} parent=11 // pred_fallthru
          _
      $region12: #{tpu_custom_call.1} parent=5 // pred_fallthru
        _
      %p212 = scmp.lt.s32.totalorder %s21, 2
      // Predicated region
      $region17: #{tpu_custom_call.1} parent=5 // pred_check
        %p213 = pneg %p212
      $region18: #{tpu_custom_call.1} parent=5 // pred_check_branch
        %215 = sbr.rel (%p213) target = $region20
      $region19: #{tpu_custom_call.1} parent=5 // pred_region
        // Predicated region
        $region21: #{tpu_custom_call.1} parent=19 // pred_check
          %p216 = pneg %p62
        $region22: #{tpu_custom_call.1} parent=19 // pred_check_branch
          %218 = sbr.rel (%p216) target = $region24
        $region23: #{tpu_custom_call.1} parent=19 // pred_region
          %s219 = sand.u32 %s52, 1
          %s220 = scalar_lea.sflag [#allocation4], %s219
          %s221 = sand.u32 %s52, 1
          %s222 = smul.addr %s221, 128
          %s223 = scalar_lea.vmem [#allocation3], %s222
          %s224 = smul.u32 32, %s28
          %s226 = ssub.s32 2048, 2048
          %227 = vsyncadd %s220, %s226
          %s228 = sadd.s32 %s30, %s224
          %s229 = smul.addr %s228, 64
          %s230 = scalar_lea.hbm %s0, %s229
          %s231 = sshll.u32 %s223, 4
          %s232 = int_to_ptr.vmem [resolvable:$true] %s231
          %237 = dma.hbm_to_vmem [thread:$0]  %s230, 2048, %s232, %s220, 64, 64, 4
        $region24: #{tpu_custom_call.1} parent=19 // pred_fallthru
          _
      $region20: #{tpu_custom_call.1} parent=5 // pred_fallthru
        _
      %p238 = scmp.le.s32.totalorder 1, %s21
      %p239 = scmp.lt.s32.totalorder %s21, 3
      %p240 = pnand %p238, %p239
      %p241 = pneg %p240
      // Predicated region
      $region25: #{tpu_custom_call.1} parent=5 // pred_check
        _
      $region26: #{tpu_custom_call.1} parent=5 // pred_check_branch
        %243 = sbr.rel (%p240) target = $region28
      $region27: #{tpu_custom_call.1} parent=5 // pred_region
        %s244 = ssub.s32 %s21, 1
        %s245 = sand.u32 %s55, 1
        %s246 = scalar_lea.sflag [#allocation4], %s245
        %s247 = sand.u32 %s55, 1
        %s248 = smul.addr %s247, 128
        %s249 = scalar_lea.vmem [#allocation3], %s248
        // Predicated region
        $region29: #{tpu_custom_call.1} parent=27 // pred_check
          %p250 = pneg %p68
        $region30: #{tpu_custom_call.1} parent=27 // pred_check_branch
          %252 = sbr.rel (%p250) target = $region32
        $region31: #{tpu_custom_call.1} parent=27 // pred_region
          %253 = dma.done %s246, 2048
        $region32: #{tpu_custom_call.1} parent=27 // pred_fallthru
          _
        // Predicated region
        $region33: #{tpu_custom_call.1} parent=27 // pred_check
          %p254 = pneg %p96
        $region34: #{tpu_custom_call.1} parent=27 // pred_check_branch
          %256 = sbr.rel (%p254) target = $region36
        $region35: #{tpu_custom_call.1} parent=27 // pred_region
          %257 = dma.done [#allocation7], 1024
        $region36: #{tpu_custom_call.1} parent=27 // pred_fallthru
          _
        %s258 = sand.u32 %s55, 1
        %s259 = scalar_lea.sflag [#allocation4], %s258
        %s260 = sand.u32 %s55, 1
        %s261 = smul.addr %s260, 128
        %s262 = scalar_lea.vmem [#allocation3], %s261
        %p263 = pneg %p68
        %p264 = pneg %p65
        %p265 = pneg %p96
        %p266 = pneg %p93
        %p267 = pneg %p124
        %p268 = pneg %p121
        %s269 = sand.u32 %s111, 1
        %s270 = scalar_lea.sflag [#allocation5], %s269
        %s271 = sand.u32 %s111, 1
        %s272 = smul.addr %s271, 128
        %s273 = scalar_lea.vmem [#allocation8], %s272
        %p274 = pneg %p152
        %p275 = pneg %p149
        %s276 = sand.u32 %s26, 1
        %s277 = scalar_lea.sflag [#allocation10], %s276
        %s278 = sand.u32 %s139, 1
        %s279 = scalar_lea.vmem [#allocation9], %s278
        %p280 = pneg %p180
        %p281 = pneg %p177
        %s282 = sand.u32 %s26, 1
        %s283 = scalar_lea.sflag [#allocation10], %s282
        %s284 = sand.u32 %s167, 1
        %s285 = scalar_lea.vmem [#allocation11], %s284
        %s286 = smul.u32 32, %s31
        %s287 = smul.u32 16, %s33
        %s288 = smul.u32 32, %s31
        %p290 = scmp.eq.s32.totalorder %s33, 0
        // Predicated region
        $region37: #{tpu_custom_call.1} parent=27 // pred_check
          %p291 = pneg %p290
        $region38: #{tpu_custom_call.1} parent=27 // pred_check_branch
          %293 = sbr.rel (%p291) target = $region40
        $region39: #{tpu_custom_call.1} parent=27 // pred_region
          %294 = vst [vmem:[#allocation2] sm:$0xff] 0.0
          %295 = vst [vmem:[#allocation2 + $0x8] sm:$0xff] 0.0
          %296 = vst [vmem:[#allocation2 + $0x10] sm:$0xff] 0.0
          %297 = vst [vmem:[#allocation2 + $0x18] sm:$0xff] 0.0
          %298 = vst [vmem:[#allocation2 + $0x20] sm:$0xff] 0.0
          %299 = vst [vmem:[#allocation2 + $0x28] sm:$0xff] 0.0
          %300 = vst [vmem:[#allocation2 + $0x30] sm:$0xff] 0.0
          %301 = vst [vmem:[#allocation2 + $0x38] sm:$0xff] 0.0
          %302 = vst [vmem:[#allocation2 + $0x40] sm:$0xff] 0.0
          %303 = vst [vmem:[#allocation2 + $0x48] sm:$0xff] 0.0
          %304 = vst [vmem:[#allocation2 + $0x50] sm:$0xff] 0.0
          %305 = vst [vmem:[#allocation2 + $0x58] sm:$0xff] 0.0
          %306 = vst [vmem:[#allocation2 + $0x60] sm:$0xff] 0.0
          %307 = vst [vmem:[#allocation2 + $0x68] sm:$0xff] 0.0
          %308 = vst [vmem:[#allocation2 + $0x70] sm:$0xff] 0.0
          %309 = vst [vmem:[#allocation2 + $0x78] sm:$0xff] 0.0
          %310 = vst [vmem:[#allocation2 + $0x80] sm:$0xff] 0.0
          %311 = vst [vmem:[#allocation2 + $0x88] sm:$0xff] 0.0
          %312 = vst [vmem:[#allocation2 + $0x90] sm:$0xff] 0.0
          %313 = vst [vmem:[#allocation2 + $0x98] sm:$0xff] 0.0
          %314 = vst [vmem:[#allocation2 + $0xa0] sm:$0xff] 0.0
          %315 = vst [vmem:[#allocation2 + $0xa8] sm:$0xff] 0.0
          %316 = vst [vmem:[#allocation2 + $0xb0] sm:$0xff] 0.0
          %317 = vst [vmem:[#allocation2 + $0xb8] sm:$0xff] 0.0
          %318 = vst [vmem:[#allocation2 + $0xc0] sm:$0xff] 0.0
          %319 = vst [vmem:[#allocation2 + $0xc8] sm:$0xff] 0.0
          %320 = vst [vmem:[#allocation2 + $0xd0] sm:$0xff] 0.0
          %321 = vst [vmem:[#allocation2 + $0xd8] sm:$0xff] 0.0
          %322 = vst [vmem:[#allocation2 + $0xe0] sm:$0xff] 0.0
          %323 = vst [vmem:[#allocation2 + $0xe8] sm:$0xff] 0.0
          %324 = vst [vmem:[#allocation2 + $0xf0] sm:$0xff] 0.0
          %325 = vst [vmem:[#allocation2 + $0xf8] sm:$0xff] 0.0
        $region40: #{tpu_custom_call.1} parent=27 // pred_fallthru
          _
        %v326 = vld [vmem:[#allocation2] sm:$0xff]
        %v327 = vld [vmem:[#allocation2 + $0x8] sm:$0xff]
        %v328 = vld [vmem:[#allocation2 + $0x10] sm:$0xff]
        %v329 = vld [vmem:[#allocation2 + $0x18] sm:$0xff]
        %v330 = vld [vmem:[#allocation2 + $0x20] sm:$0xff]
        %v331 = vld [vmem:[#allocation2 + $0x28] sm:$0xff]
        %v332 = vld [vmem:[#allocation2 + $0x30] sm:$0xff]
        %v333 = vld [vmem:[#allocation2 + $0x38] sm:$0xff]
        %v334 = vld [vmem:[#allocation2 + $0x40] sm:$0xff]
        %v335 = vld [vmem:[#allocation2 + $0x48] sm:$0xff]
        %v336 = vld [vmem:[#allocation2 + $0x50] sm:$0xff]
        %v337 = vld [vmem:[#allocation2 + $0x58] sm:$0xff]
        %v338 = vld [vmem:[#allocation2 + $0x60] sm:$0xff]
        %v339 = vld [vmem:[#allocation2 + $0x68] sm:$0xff]
        %v340 = vld [vmem:[#allocation2 + $0x70] sm:$0xff]
        %v341 = vld [vmem:[#allocation2 + $0x78] sm:$0xff]
        %v342 = vld [vmem:[#allocation2 + $0x80] sm:$0xff]
        %v343 = vld [vmem:[#allocation2 + $0x88] sm:$0xff]
        %v344 = vld [vmem:[#allocation2 + $0x90] sm:$0xff]
        %v345 = vld [vmem:[#allocation2 + $0x98] sm:$0xff]
        %v346 = vld [vmem:[#allocation2 + $0xa0] sm:$0xff]
        %v347 = vld [vmem:[#allocation2 + $0xa8] sm:$0xff]
        %v348 = vld [vmem:[#allocation2 + $0xb0] sm:$0xff]
        %v349 = vld [vmem:[#allocation2 + $0xb8] sm:$0xff]
        %v350 = vld [vmem:[#allocation2 + $0xc0] sm:$0xff]
        %v351 = vld [vmem:[#allocation2 + $0xc8] sm:$0xff]
        %v352 = vld [vmem:[#allocation2 + $0xd0] sm:$0xff]
        %v353 = vld [vmem:[#allocation2 + $0xd8] sm:$0xff]
        %v354 = vld [vmem:[#allocation2 + $0xe0] sm:$0xff]
        %v355 = vld [vmem:[#allocation2 + $0xe8] sm:$0xff]
        %v356 = vld [vmem:[#allocation2 + $0xf0] sm:$0xff]
        %v357 = vld [vmem:[#allocation2 + $0xf8] sm:$0xff]
        %v358 = vld [vmem:[%s249] sm:$0xf]
        %v359 = vld [vmem:[%s249 + $0x4] sm:$0xf]
        %v360 = vld [vmem:[%s249 + $0x8] sm:$0xf]
        %v361 = vld [vmem:[%s249 + $0xc] sm:$0xf]
        %v362 = vld [vmem:[%s249 + $0x10] sm:$0xf]
        %v363 = vld [vmem:[%s249 + $0x14] sm:$0xf]
        %v364 = vld [vmem:[%s249 + $0x18] sm:$0xf]
        %v365 = vld [vmem:[%s249 + $0x1c] sm:$0xf]
        %v366 = vld [vmem:[%s249 + $0x20] sm:$0xf]
        %v367 = vld [vmem:[%s249 + $0x24] sm:$0xf]
        %v368 = vld [vmem:[%s249 + $0x28] sm:$0xf]
        %v369 = vld [vmem:[%s249 + $0x2c] sm:$0xf]
        %v370 = vld [vmem:[%s249 + $0x30] sm:$0xf]
        %v371 = vld [vmem:[%s249 + $0x34] sm:$0xf]
        %v372 = vld [vmem:[%s249 + $0x38] sm:$0xf]
        %v373 = vld [vmem:[%s249 + $0x3c] sm:$0xf]
        %v374 = vld [vmem:[%s249 + $0x40] sm:$0xf]
        %v375 = vld [vmem:[%s249 + $0x44] sm:$0xf]
        %v376 = vld [vmem:[%s249 + $0x48] sm:$0xf]
        %v377 = vld [vmem:[%s249 + $0x4c] sm:$0xf]
        %v378 = vld [vmem:[%s249 + $0x50] sm:$0xf]
        %v379 = vld [vmem:[%s249 + $0x54] sm:$0xf]
        %v380 = vld [vmem:[%s249 + $0x58] sm:$0xf]
        %v381 = vld [vmem:[%s249 + $0x5c] sm:$0xf]
        %v382 = vld [vmem:[%s249 + $0x60] sm:$0xf]
        %v383 = vld [vmem:[%s249 + $0x64] sm:$0xf]
        %v384 = vld [vmem:[%s249 + $0x68] sm:$0xf]
        %v385 = vld [vmem:[%s249 + $0x6c] sm:$0xf]
        %v386 = vld [vmem:[%s249 + $0x70] sm:$0xf]
        %v387 = vld [vmem:[%s249 + $0x74] sm:$0xf]
        %v388 = vld [vmem:[%s249 + $0x78] sm:$0xf]
        %v389 = vld [vmem:[%s249 + $0x7c] sm:$0xf]
        %v390 = vld [vmem:[#allocation6] sm:$0xf]
        %v391 = vld [vmem:[#allocation6 + $0x4] sm:$0xf]
        %v392 = vld [vmem:[#allocation6 + $0x8] sm:$0xf]
        %v393 = vld [vmem:[#allocation6 + $0xc] sm:$0xf]
        %v394 = vld [vmem:[#allocation6 + $0x10] sm:$0xf]
        %v395 = vld [vmem:[#allocation6 + $0x14] sm:$0xf]
        %v396 = vld [vmem:[#allocation6 + $0x18] sm:$0xf]
        %v397 = vld [vmem:[#allocation6 + $0x1c] sm:$0xf]
        %v398 = vld [vmem:[#allocation6 + $0x20] sm:$0xf]
        %v399 = vld [vmem:[#allocation6 + $0x24] sm:$0xf]
        %v400 = vld [vmem:[#allocation6 + $0x28] sm:$0xf]
        %v401 = vld [vmem:[#allocation6 + $0x2c] sm:$0xf]
        %v402 = vld [vmem:[#allocation6 + $0x30] sm:$0xf]
        %v403 = vld [vmem:[#allocation6 + $0x34] sm:$0xf]
        %v404 = vld [vmem:[#allocation6 + $0x38] sm:$0xf]
        %v405 = vld [vmem:[#allocation6 + $0x3c] sm:$0xf]
        %v438 = vunpack.c.l.b16 %v358
        %v439 = vunpack.c.l.b16 %v359
        %v440 = vunpack.c.l.b16 %v360
        %v441 = vunpack.c.l.b16 %v361
        %v442 = vunpack.c.l.b16 %v362
        %v443 = vunpack.c.l.b16 %v363
        %v444 = vunpack.c.l.b16 %v364
        %v445 = vunpack.c.l.b16 %v365
        %v446 = vunpack.c.l.b16 %v366
        %v447 = vunpack.c.l.b16 %v367
        %v448 = vunpack.c.l.b16 %v368
        %v449 = vunpack.c.l.b16 %v369
        %v450 = vunpack.c.l.b16 %v370
        %v451 = vunpack.c.l.b16 %v371
        %v452 = vunpack.c.l.b16 %v372
        %v453 = vunpack.c.l.b16 %v373
        %v454 = vunpack.c.l.b16 %v374
        %v455 = vunpack.c.l.b16 %v375
        %v456 = vunpack.c.l.b16 %v376
        %v457 = vunpack.c.l.b16 %v377
        %v458 = vunpack.c.l.b16 %v378
        %v459 = vunpack.c.l.b16 %v379
        %v460 = vunpack.c.l.b16 %v380
        %v461 = vunpack.c.l.b16 %v381
        %v462 = vunpack.c.l.b16 %v382
        %v463 = vunpack.c.l.b16 %v383
        %v464 = vunpack.c.l.b16 %v384
        %v465 = vunpack.c.l.b16 %v385
        %v466 = vunpack.c.l.b16 %v386
        %v467 = vunpack.c.l.b16 %v387
        %v468 = vunpack.c.l.b16 %v388
        %v469 = vunpack.c.l.b16 %v389
        %v470 = vpack.c.b16 %v439, %v438
        %v471 = vpack.c.b16 %v441, %v440
        %v472 = vpack.c.b16 %v443, %v442
        %v473 = vpack.c.b16 %v445, %v444
        %v474 = vpack.c.b16 %v447, %v446
        %v475 = vpack.c.b16 %v449, %v448
        %v476 = vpack.c.b16 %v451, %v450
        %v477 = vpack.c.b16 %v453, %v452
        %v478 = vpack.c.b16 %v455, %v454
        %v479 = vpack.c.b16 %v457, %v456
        %v480 = vpack.c.b16 %v459, %v458
        %v481 = vpack.c.b16 %v461, %v460
        %v482 = vpack.c.b16 %v463, %v462
        %v483 = vpack.c.b16 %v465, %v464
        %v484 = vpack.c.b16 %v467, %v466
        %v485 = vpack.c.b16 %v469, %v468
        %v518 = vunpack.c.l.b16 %v390
        %v519 = vunpack.c.l.b16 %v391
        %v520 = vunpack.c.l.b16 %v392
        %v521 = vunpack.c.l.b16 %v393
        %v522 = vunpack.c.l.b16 %v394
        %v523 = vunpack.c.l.b16 %v395
        %v524 = vunpack.c.l.b16 %v396
        %v525 = vunpack.c.l.b16 %v397
        %v526 = vunpack.c.l.b16 %v398
        %v527 = vunpack.c.l.b16 %v399
        %v528 = vunpack.c.l.b16 %v400
        %v529 = vunpack.c.l.b16 %v401
        %v530 = vunpack.c.l.b16 %v402
        %v531 = vunpack.c.l.b16 %v403
        %v532 = vunpack.c.l.b16 %v404
        %v533 = vunpack.c.l.b16 %v405
        %v534 = vpack.c.b16 %v519, %v518
        %v535 = vpack.c.b16 %v521, %v520
        %v536 = vpack.c.b16 %v523, %v522
        %v537 = vpack.c.b16 %v525, %v524
        %v538 = vpack.c.b16 %v527, %v526
        %v539 = vpack.c.b16 %v529, %v528
        %v540 = vpack.c.b16 %v531, %v530
        %v541 = vpack.c.b16 %v533, %v532
        %550 = vmatprep.subr.bf16.mxu0 0
        %551 = vmatpush1.bf16.msra.mxu0 %v534
        %552 = vmatprep.subr.bf16.mxu0 0
        %553 = vmatpush1.bf16.msra.mxu0 %v535
        %554 = vmatprep.subr.bf16.mxu0 0
        %555 = vmatpush1.bf16.msra.mxu0 %v536
        %556 = vmatprep.subr.bf16.mxu0 0
        %557 = vmatpush1.bf16.msra.mxu0 %v537
        %558 = vmatprep.subr.bf16.mxu0 0
        %559 = vmatpush1.bf16.msra.mxu0 %v538
        %560 = vmatprep.subr.bf16.mxu0 0
        %561 = vmatpush1.bf16.msra.mxu0 %v539
        %562 = vmatprep.subr.bf16.mxu0 0
        %563 = vmatpush1.bf16.msra.mxu0 %v540
        %564 = vmatprep.subr.bf16.mxu0 0
        %565 = vmatpush1.bf16.msra.mxu0 %v541
        %566 = vmatprep.subr.bf16.mxu0 0
        %567 = vmatpush1.bf16.msra.mxu0 0
        %568 = vmatprep.subr.bf16.mxu0 0
        %569 = vmatpush1.bf16.msra.mxu0 0
        %570 = vmatprep.subr.bf16.mxu0 0
        %571 = vmatpush1.bf16.msra.mxu0 0
        %572 = vmatprep.subr.bf16.mxu0 0
        %573 = vmatpush1.bf16.msra.mxu0 0
        %574 = vmatprep.subr.bf16.mxu0 0
        %575 = vmatpush1.bf16.msra.mxu0 0
        %576 = vmatprep.subr.bf16.mxu0 0
        %577 = vmatpush1.bf16.msra.mxu0 0
        %578 = vmatprep.subr.bf16.mxu0 0
        %579 = vmatpush1.bf16.msra.mxu0 0
        %580 = vmatprep.subr.bf16.mxu0 0
        %581 = vmatpush1.bf16.msra.mxu0 0
        %582 = vmatprep.mubr.bf16.mxu0 0
        %583 = vmatmul.mubr.bf16.gmra.mrb[0].mxu0 %v470
        %v584 = vpop.f32.mrb[0].mxu0
        %v585 = vadd.f32 0.0, %v584
        %v586 = vpop.f32.mrb[0].mxu0
        %v587 = vpop.f32.mrb[0].mxu0
        %v588 = vadd.f32 0.0, %v587
        %v589 = vpop.f32.mrb[0].mxu0
        %590 = vmatprep.mubr.bf16.mxu0 0
        %591 = vmatmul.mubr.bf16.gmra.mrb[0].mxu0 %v471
        %v592 = vpop.f32.mrb[0].mxu0
        %v593 = vadd.f32 0.0, %v592
        %v594 = vpop.f32.mrb[0].mxu0
        %v595 = vpop.f32.mrb[0].mxu0
        %v596 = vadd.f32 0.0, %v595
        %v597 = vpop.f32.mrb[0].mxu0
        %598 = vmatprep.mubr.bf16.mxu0 0
        %599 = vmatmul.mubr.bf16.gmra.mrb[0].mxu0 %v472
        %v600 = vpop.f32.mrb[0].mxu0
        %v601 = vadd.f32 0.0, %v600
        %v602 = vpop.f32.mrb[0].mxu0
        %v603 = vpop.f32.mrb[0].mxu0
        %v604 = vadd.f32 0.0, %v603
        %v605 = vpop.f32.mrb[0].mxu0
        %606 = vmatprep.mubr.bf16.mxu0 0
        %607 = vmatmul.mubr.bf16.gmra.mrb[0].mxu0 %v473
        %v608 = vpop.f32.mrb[0].mxu0
        %v609 = vadd.f32 0.0, %v608
        %v610 = vpop.f32.mrb[0].mxu0
        %v611 = vpop.f32.mrb[0].mxu0
        %v612 = vadd.f32 0.0, %v611
        %v613 = vpop.f32.mrb[0].mxu0
        %614 = vmatprep.mubr.bf16.mxu0 0
        %615 = vmatmul.mubr.bf16.gmra.mrb[0].mxu0 %v474
        %v616 = vpop.f32.mrb[0].mxu0
        %v617 = vadd.f32 0.0, %v616
        %v618 = vpop.f32.mrb[0].mxu0
        %v619 = vpop.f32.mrb[0].mxu0
        %v620 = vadd.f32 0.0, %v619
        %v621 = vpop.f32.mrb[0].mxu0
        %622 = vmatprep.mubr.bf16.mxu0 0
        %623 = vmatmul.mubr.bf16.gmra.mrb[0].mxu0 %v475
        %v624 = vpop.f32.mrb[0].mxu0
        %v625 = vadd.f32 0.0, %v624
        %v626 = vpop.f32.mrb[0].mxu0
        %v627 = vpop.f32.mrb[0].mxu0
        %v628 = vadd.f32 0.0, %v627
        %v629 = vpop.f32.mrb[0].mxu0
        %630 = vmatprep.mubr.bf16.mxu0 0
        %631 = vmatmul.mubr.bf16.gmra.mrb[0].mxu0 %v476
        %v632 = vpop.f32.mrb[0].mxu0
        %v633 = vadd.f32 0.0, %v632
        %v634 = vpop.f32.mrb[0].mxu0
        %v635 = vpop.f32.mrb[0].mxu0
        %v636 = vadd.f32 0.0, %v635
        %v637 = vpop.f32.mrb[0].mxu0
        %638 = vmatprep.mubr.bf16.mxu0 0
        %639 = vmatmul.mubr.bf16.gmra.mrb[0].mxu0 %v477
        %v640 = vpop.f32.mrb[0].mxu0
        %v641 = vadd.f32 0.0, %v640
        %v642 = vpop.f32.mrb[0].mxu0
        %v643 = vpop.f32.mrb[0].mxu0
        %v644 = vadd.f32 0.0, %v643
        %v645 = vpop.f32.mrb[0].mxu0
        %646 = vmatprep.mubr.bf16.mxu0 0
        %647 = vmatmul.mubr.bf16.gmra.mrb[0].mxu0 %v478
        %v648 = vpop.f32.mrb[0].mxu0
        %v649 = vadd.f32 0.0, %v648
        %v650 = vpop.f32.mrb[0].mxu0
        %v651 = vpop.f32.mrb[0].mxu0
        %v652 = vadd.f32 0.0, %v651
        %v653 = vpop.f32.mrb[0].mxu0
        %654 = vmatprep.mubr.bf16.mxu0 0
        %655 = vmatmul.mubr.bf16.gmra.mrb[0].mxu0 %v479
        %v656 = vpop.f32.mrb[0].mxu0
        %v657 = vadd.f32 0.0, %v656
        %v658 = vpop.f32.mrb[0].mxu0
        %v659 = vpop.f32.mrb[0].mxu0
        %v660 = vadd.f32 0.0, %v659
        %v661 = vpop.f32.mrb[0].mxu0
        %662 = vmatprep.mubr.bf16.mxu0 0
        %663 = vmatmul.mubr.bf16.gmra.mrb[0].mxu0 %v480
        %v664 = vpop.f32.mrb[0].mxu0
        %v665 = vadd.f32 0.0, %v664
        %v666 = vpop.f32.mrb[0].mxu0
        %v667 = vpop.f32.mrb[0].mxu0
        %v668 = vadd.f32 0.0, %v667
        %v669 = vpop.f32.mrb[0].mxu0
        %670 = vmatprep.mubr.bf16.mxu0 0
        %671 = vmatmul.mubr.bf16.gmra.mrb[0].mxu0 %v481
        %v672 = vpop.f32.mrb[0].mxu0
        %v673 = vadd.f32 0.0, %v672
        %v674 = vpop.f32.mrb[0].mxu0
        %v675 = vpop.f32.mrb[0].mxu0
        %v676 = vadd.f32 0.0, %v675
        %v677 = vpop.f32.mrb[0].mxu0
        %678 = vmatprep.mubr.bf16.mxu0 0
        %679 = vmatmul.mubr.bf16.gmra.mrb[0].mxu0 %v482
        %v680 = vpop.f32.mrb[0].mxu0
        %v681 = vadd.f32 0.0, %v680
        %v682 = vpop.f32.mrb[0].mxu0
        %v683 = vpop.f32.mrb[0].mxu0
        %v684 = vadd.f32 0.0, %v683
        %v685 = vpop.f32.mrb[0].mxu0
        %686 = vmatprep.mubr.bf16.mxu0 0
        %687 = vmatmul.mubr.bf16.gmra.mrb[0].mxu0 %v483
        %v688 = vpop.f32.mrb[0].mxu0
        %v689 = vadd.f32 0.0, %v688
        %v690 = vpop.f32.mrb[0].mxu0
        %v691 = vpop.f32.mrb[0].mxu0
        %v692 = vadd.f32 0.0, %v691
        %v693 = vpop.f32.mrb[0].mxu0
        %694 = vmatprep.mubr.bf16.mxu0 0
        %695 = vmatmul.mubr.bf16.gmra.mrb[0].mxu0 %v484
        %v696 = vpop.f32.mrb[0].mxu0
        %v697 = vadd.f32 0.0, %v696
        %v698 = vpop.f32.mrb[0].mxu0
        %v699 = vpop.f32.mrb[0].mxu0
        %v700 = vadd.f32 0.0, %v699
        %v701 = vpop.f32.mrb[0].mxu0
        %702 = vmatprep.mubr.bf16.mxu0 0
        %703 = vmatmul.mubr.bf16.gmra.mrb[0].mxu0 %v485
        %v704 = vpop.f32.mrb[0].mxu0
        %v705 = vadd.f32 0.0, %v704
        %v706 = vpop.f32.mrb[0].mxu0
        %v707 = vpop.f32.mrb[0].mxu0
        %v708 = vadd.f32 0.0, %v707
        %v709 = vpop.f32.mrb[0].mxu0
        %710 = vdwg.mxu0
        %v711 = vadd.f32 %v326, %v585
        %v712 = vadd.f32 %v327, %v588
        %v713 = vadd.f32 %v328, %v593
        %v714 = vadd.f32 %v329, %v596
        %v715 = vadd.f32 %v330, %v601
        %v716 = vadd.f32 %v331, %v604
        %v717 = vadd.f32 %v332, %v609
        %v718 = vadd.f32 %v333, %v612
        %v719 = vadd.f32 %v334, %v617
        %v720 = vadd.f32 %v335, %v620
        %v721 = vadd.f32 %v336, %v625
        %v722 = vadd.f32 %v337, %v628
        %v723 = vadd.f32 %v338, %v633
        %v724 = vadd.f32 %v339, %v636
        %v725 = vadd.f32 %v340, %v641
        %v726 = vadd.f32 %v341, %v644
        %v727 = vadd.f32 %v342, %v649
        %v728 = vadd.f32 %v343, %v652
        %v729 = vadd.f32 %v344, %v657
        %v730 = vadd.f32 %v345, %v660
        %v731 = vadd.f32 %v346, %v665
        %v732 = vadd.f32 %v347, %v668
        %v733 = vadd.f32 %v348, %v673
        %v734 = vadd.f32 %v349, %v676
        %v735 = vadd.f32 %v350, %v681
        %v736 = vadd.f32 %v351, %v684
        %v737 = vadd.f32 %v352, %v689
        %v738 = vadd.f32 %v353, %v692
        %v739 = vadd.f32 %v354, %v697
        %v740 = vadd.f32 %v355, %v700
        %v741 = vadd.f32 %v356, %v705
        %v742 = vadd.f32 %v357, %v708
        %743 = vst [vmem:[#allocation2] sm:$0xff] %v711
        %744 = vst [vmem:[#allocation2 + $0x8] sm:$0xff] %v712
        %745 = vst [vmem:[#allocation2 + $0x10] sm:$0xff] %v713
        %746 = vst [vmem:[#allocation2 + $0x18] sm:$0xff] %v714
        %747 = vst [vmem:[#allocation2 + $0x20] sm:$0xff] %v715
        %748 = vst [vmem:[#allocation2 + $0x28] sm:$0xff] %v716
        %749 = vst [vmem:[#allocation2 + $0x30] sm:$0xff] %v717
        %750 = vst [vmem:[#allocation2 + $0x38] sm:$0xff] %v718
        %751 = vst [vmem:[#allocation2 + $0x40] sm:$0xff] %v719
        %752 = vst [vmem:[#allocation2 + $0x48] sm:$0xff] %v720
        %753 = vst [vmem:[#allocation2 + $0x50] sm:$0xff] %v721
        %754 = vst [vmem:[#allocation2 + $0x58] sm:$0xff] %v722
        %755 = vst [vmem:[#allocation2 + $0x60] sm:$0xff] %v723
        %756 = vst [vmem:[#allocation2 + $0x68] sm:$0xff] %v724
        %757 = vst [vmem:[#allocation2 + $0x70] sm:$0xff] %v725
        %758 = vst [vmem:[#allocation2 + $0x78] sm:$0xff] %v726
        %759 = vst [vmem:[#allocation2 + $0x80] sm:$0xff] %v727
        %760 = vst [vmem:[#allocation2 + $0x88] sm:$0xff] %v728
        %761 = vst [vmem:[#allocation2 + $0x90] sm:$0xff] %v729
        %762 = vst [vmem:[#allocation2 + $0x98] sm:$0xff] %v730
        %763 = vst [vmem:[#allocation2 + $0xa0] sm:$0xff] %v731
        %764 = vst [vmem:[#allocation2 + $0xa8] sm:$0xff] %v732
        %765 = vst [vmem:[#allocation2 + $0xb0] sm:$0xff] %v733
        %766 = vst [vmem:[#allocation2 + $0xb8] sm:$0xff] %v734
        %767 = vst [vmem:[#allocation2 + $0xc0] sm:$0xff] %v735
        %768 = vst [vmem:[#allocation2 + $0xc8] sm:$0xff] %v736
        %769 = vst [vmem:[#allocation2 + $0xd0] sm:$0xff] %v737
        %770 = vst [vmem:[#allocation2 + $0xd8] sm:$0xff] %v738
        %771 = vst [vmem:[#allocation2 + $0xe0] sm:$0xff] %v739
        %772 = vst [vmem:[#allocation2 + $0xe8] sm:$0xff] %v740
        %773 = vst [vmem:[#allocation2 + $0xf0] sm:$0xff] %v741
        %774 = vst [vmem:[#allocation2 + $0xf8] sm:$0xff] %v742
        // Predicated region
        $region41: #{tpu_custom_call.1} parent=27 // pred_check
          %p775 = pneg %p290
        $region42: #{tpu_custom_call.1} parent=27 // pred_check_branch
          %777 = sbr.rel (%p775) target = $region44
        $region43: #{tpu_custom_call.1} parent=27 // pred_region
          %v778 = vld [vmem:[#allocation2] sm:$0xff]
          %v779 = vld [vmem:[#allocation2 + $0x8] sm:$0xff]
          %v780 = vld [vmem:[#allocation2 + $0x10] sm:$0xff]
          %v781 = vld [vmem:[#allocation2 + $0x18] sm:$0xff]
          %v782 = vld [vmem:[#allocation2 + $0x20] sm:$0xff]
          %v783 = vld [vmem:[#allocation2 + $0x28] sm:$0xff]
          %v784 = vld [vmem:[#allocation2 + $0x30] sm:$0xff]
          %v785 = vld [vmem:[#allocation2 + $0x38] sm:$0xff]
          %v786 = vld [vmem:[#allocation2 + $0x40] sm:$0xff]
          %v787 = vld [vmem:[#allocation2 + $0x48] sm:$0xff]
          %v788 = vld [vmem:[#allocation2 + $0x50] sm:$0xff]
          %v789 = vld [vmem:[#allocation2 + $0x58] sm:$0xff]
          %v790 = vld [vmem:[#allocation2 + $0x60] sm:$0xff]
          %v791 = vld [vmem:[#allocation2 + $0x68] sm:$0xff]
          %v792 = vld [vmem:[#allocation2 + $0x70] sm:$0xff]
          %v793 = vld [vmem:[#allocation2 + $0x78] sm:$0xff]
          %v794 = vld [vmem:[#allocation2 + $0x80] sm:$0xff]
          %v795 = vld [vmem:[#allocation2 + $0x88] sm:$0xff]
          %v796 = vld [vmem:[#allocation2 + $0x90] sm:$0xff]
          %v797 = vld [vmem:[#allocation2 + $0x98] sm:$0xff]
          %v798 = vld [vmem:[#allocation2 + $0xa0] sm:$0xff]
          %v799 = vld [vmem:[#allocation2 + $0xa8] sm:$0xff]
          %v800 = vld [vmem:[#allocation2 + $0xb0] sm:$0xff]
          %v801 = vld [vmem:[#allocation2 + $0xb8] sm:$0xff]
          %v802 = vld [vmem:[#allocation2 + $0xc0] sm:$0xff]
          %v803 = vld [vmem:[#allocation2 + $0xc8] sm:$0xff]
          %v804 = vld [vmem:[#allocation2 + $0xd0] sm:$0xff]
          %v805 = vld [vmem:[#allocation2 + $0xd8] sm:$0xff]
          %v806 = vld [vmem:[#allocation2 + $0xe0] sm:$0xff]
          %v807 = vld [vmem:[#allocation2 + $0xe8] sm:$0xff]
          %v808 = vld [vmem:[#allocation2 + $0xf0] sm:$0xff]
          %v809 = vld [vmem:[#allocation2 + $0xf8] sm:$0xff]
          %v810 = vpack.c.bf16 %v779, %v778
          %v811 = vpack.c.bf16 %v781, %v780
          %v812 = vpack.c.bf16 %v783, %v782
          %v813 = vpack.c.bf16 %v785, %v784
          %v814 = vpack.c.bf16 %v787, %v786
          %v815 = vpack.c.bf16 %v789, %v788
          %v816 = vpack.c.bf16 %v791, %v790
          %v817 = vpack.c.bf16 %v793, %v792
          %v818 = vpack.c.bf16 %v795, %v794
          %v819 = vpack.c.bf16 %v797, %v796
          %v820 = vpack.c.bf16 %v799, %v798
          %v821 = vpack.c.bf16 %v801, %v800
          %v822 = vpack.c.bf16 %v803, %v802
          %v823 = vpack.c.bf16 %v805, %v804
          %v824 = vpack.c.bf16 %v807, %v806
          %v825 = vpack.c.bf16 %v809, %v808
          %v842 = vunpack.c.l.b16 %v810
          %v843 = vunpack.c.h.b16 %v810
          %v844 = vunpack.c.l.b16 %v811
          %v845 = vunpack.c.h.b16 %v811
          %v846 = vunpack.c.l.b16 %v812
          %v847 = vunpack.c.h.b16 %v812
          %v848 = vunpack.c.l.b16 %v813
          %v849 = vunpack.c.h.b16 %v813
          %v850 = vunpack.c.l.b16 %v814
          %v851 = vunpack.c.h.b16 %v814
          %v852 = vunpack.c.l.b16 %v815
          %v853 = vunpack.c.h.b16 %v815
          %v854 = vunpack.c.l.b16 %v816
          %v855 = vunpack.c.h.b16 %v816
          %v856 = vunpack.c.l.b16 %v817
          %v857 = vunpack.c.h.b16 %v817
          %v858 = vunpack.c.l.b16 %v818
          %v859 = vunpack.c.h.b16 %v818
          %v860 = vunpack.c.l.b16 %v819
          %v861 = vunpack.c.h.b16 %v819
          %v862 = vunpack.c.l.b16 %v820
          %v863 = vunpack.c.h.b16 %v820
          %v864 = vunpack.c.l.b16 %v821
          %v865 = vunpack.c.h.b16 %v821
          %v866 = vunpack.c.l.b16 %v822
          %v867 = vunpack.c.h.b16 %v822
          %v868 = vunpack.c.l.b16 %v823
          %v869 = vunpack.c.h.b16 %v823
          %v870 = vunpack.c.l.b16 %v824
          %v871 = vunpack.c.h.b16 %v824
          %v872 = vunpack.c.l.b16 %v825
          %v873 = vunpack.c.h.b16 %v825
          %v874 = vpack.c.b16 %v842, %v842
          %v875 = vpack.c.b16 %v843, %v843
          %v876 = vpack.c.b16 %v844, %v844
          %v877 = vpack.c.b16 %v845, %v845
          %v878 = vpack.c.b16 %v846, %v846
          %v879 = vpack.c.b16 %v847, %v847
          %v880 = vpack.c.b16 %v848, %v848
          %v881 = vpack.c.b16 %v849, %v849
          %v882 = vpack.c.b16 %v850, %v850
          %v883 = vpack.c.b16 %v851, %v851
          %v884 = vpack.c.b16 %v852, %v852
          %v885 = vpack.c.b16 %v853, %v853
          %v886 = vpack.c.b16 %v854, %v854
          %v887 = vpack.c.b16 %v855, %v855
          %v888 = vpack.c.b16 %v856, %v856
          %v889 = vpack.c.b16 %v857, %v857
          %v890 = vpack.c.b16 %v858, %v858
          %v891 = vpack.c.b16 %v859, %v859
          %v892 = vpack.c.b16 %v860, %v860
          %v893 = vpack.c.b16 %v861, %v861
          %v894 = vpack.c.b16 %v862, %v862
          %v895 = vpack.c.b16 %v863, %v863
          %v896 = vpack.c.b16 %v864, %v864
          %v897 = vpack.c.b16 %v865, %v865
          %v898 = vpack.c.b16 %v866, %v866
          %v899 = vpack.c.b16 %v867, %v867
          %v900 = vpack.c.b16 %v868, %v868
          %v901 = vpack.c.b16 %v869, %v869
          %v902 = vpack.c.b16 %v870, %v870
          %v903 = vpack.c.b16 %v871, %v871
          %v904 = vpack.c.b16 %v872, %v872
          %v905 = vpack.c.b16 %v873, %v873
          %938 = vst [vmem:[%s273] sm:$0xf] %v874
          %939 = vst [vmem:[%s273 + $0x4] sm:$0xf] %v875
          %940 = vst [vmem:[%s273 + $0x8] sm:$0xf] %v876
          %941 = vst [vmem:[%s273 + $0xc] sm:$0xf] %v877
          %942 = vst [vmem:[%s273 + $0x10] sm:$0xf] %v878
          %943 = vst [vmem:[%s273 + $0x14] sm:$0xf] %v879
          %944 = vst [vmem:[%s273 + $0x18] sm:$0xf] %v880
          %945 = vst [vmem:[%s273 + $0x1c] sm:$0xf] %v881
          %946 = vst [vmem:[%s273 + $0x20] sm:$0xf] %v882
          %947 = vst [vmem:[%s273 + $0x24] sm:$0xf] %v883
          %948 = vst [vmem:[%s273 + $0x28] sm:$0xf] %v884
          %949 = vst [vmem:[%s273 + $0x2c] sm:$0xf] %v885
          %950 = vst [vmem:[%s273 + $0x30] sm:$0xf] %v886
          %951 = vst [vmem:[%s273 + $0x34] sm:$0xf] %v887
          %952 = vst [vmem:[%s273 + $0x38] sm:$0xf] %v888
          %953 = vst [vmem:[%s273 + $0x3c] sm:$0xf] %v889
          %954 = vst [vmem:[%s273 + $0x40] sm:$0xf] %v890
          %955 = vst [vmem:[%s273 + $0x44] sm:$0xf] %v891
          %956 = vst [vmem:[%s273 + $0x48] sm:$0xf] %v892
          %957 = vst [vmem:[%s273 + $0x4c] sm:$0xf] %v893
          %958 = vst [vmem:[%s273 + $0x50] sm:$0xf] %v894
          %959 = vst [vmem:[%s273 + $0x54] sm:$0xf] %v895
          %960 = vst [vmem:[%s273 + $0x58] sm:$0xf] %v896
          %961 = vst [vmem:[%s273 + $0x5c] sm:$0xf] %v897
          %962 = vst [vmem:[%s273 + $0x60] sm:$0xf] %v898
          %963 = vst [vmem:[%s273 + $0x64] sm:$0xf] %v899
          %964 = vst [vmem:[%s273 + $0x68] sm:$0xf] %v900
          %965 = vst [vmem:[%s273 + $0x6c] sm:$0xf] %v901
          %966 = vst [vmem:[%s273 + $0x70] sm:$0xf] %v902
          %967 = vst [vmem:[%s273 + $0x74] sm:$0xf] %v903
          %968 = vst [vmem:[%s273 + $0x78] sm:$0xf] %v904
          %969 = vst [vmem:[%s273 + $0x7c] sm:$0xf] %v905
          %v970 = vadd.f32 %v778, %v779
          %v971 = vadd.f32 %v970, %v780
          %v972 = vadd.f32 %v971, %v781
          %v973 = vadd.f32 %v972, %v782
          %v974 = vadd.f32 %v973, %v783
          %v975 = vadd.f32 %v974, %v784
          %v976 = vadd.f32 %v975, %v785
          %v977 = vadd.f32 %v976, %v786
          %v978 = vadd.f32 %v977, %v787
          %v979 = vadd.f32 %v978, %v788
          %v980 = vadd.f32 %v979, %v789
          %v981 = vadd.f32 %v980, %v790
          %v982 = vadd.f32 %v981, %v791
          %v983 = vadd.f32 %v982, %v792
          %v984 = vadd.f32 %v983, %v793
          %v985 = vadd.f32 %v984, %v794
          %v986 = vadd.f32 %v985, %v795
          %v987 = vadd.f32 %v986, %v796
          %v988 = vadd.f32 %v987, %v797
          %v989 = vadd.f32 %v988, %v798
          %v990 = vadd.f32 %v989, %v799
          %v991 = vadd.f32 %v990, %v800
          %v992 = vadd.f32 %v991, %v801
          %v993 = vadd.f32 %v992, %v802
          %v994 = vadd.f32 %v993, %v803
          %v995 = vadd.f32 %v994, %v804
          %v996 = vadd.f32 %v995, %v805
          %v997 = vadd.f32 %v996, %v806
          %v998 = vadd.f32 %v997, %v807
          %v999 = vadd.f32 %v998, %v808
          %v1000 = vadd.f32 %v999, %v809
          %v1001 = vrot.slane %v1000, 4
          %v1002 = vadd.f32 %v1000, %v1001
          %v1003 = vrot.slane %v1002, 2
          %v1004 = vadd.f32 %v1002, %v1003
          %v1005 = vrot.slane %v1004, 1
          %v1006 = vadd.f32 %v1004, %v1005
          %1007 = vst [vmem:[%s279] sm:$0x1] %v1006
          %v1008 = vmul.f32 %v778, %v778
          %v1009 = vmul.f32 %v779, %v779
          %v1010 = vmul.f32 %v780, %v780
          %v1011 = vmul.f32 %v781, %v781
          %v1012 = vmul.f32 %v782, %v782
          %v1013 = vmul.f32 %v783, %v783
          %v1014 = vmul.f32 %v784, %v784
          %v1015 = vmul.f32 %v785, %v785
          %v1016 = vmul.f32 %v786, %v786
          %v1017 = vmul.f32 %v787, %v787
          %v1018 = vmul.f32 %v788, %v788
          %v1019 = vmul.f32 %v789, %v789
          %v1020 = vmul.f32 %v790, %v790
          %v1021 = vmul.f32 %v791, %v791
          %v1022 = vmul.f32 %v792, %v792
          %v1023 = vmul.f32 %v793, %v793
          %v1024 = vmul.f32 %v794, %v794
          %v1025 = vmul.f32 %v795, %v795
          %v1026 = vmul.f32 %v796, %v796
          %v1027 = vmul.f32 %v797, %v797
          %v1028 = vmul.f32 %v798, %v798
          %v1029 = vmul.f32 %v799, %v799
          %v1030 = vmul.f32 %v800, %v800
          %v1031 = vmul.f32 %v801, %v801
          %v1032 = vmul.f32 %v802, %v802
          %v1033 = vmul.f32 %v803, %v803
          %v1034 = vmul.f32 %v804, %v804
          %v1035 = vmul.f32 %v805, %v805
          %v1036 = vmul.f32 %v806, %v806
          %v1037 = vmul.f32 %v807, %v807
          %v1038 = vmul.f32 %v808, %v808
          %v1039 = vmul.f32 %v809, %v809
          %v1040 = vadd.f32 %v1008, %v1009
          %v1041 = vadd.f32 %v1040, %v1010
          %v1042 = vadd.f32 %v1041, %v1011
          %v1043 = vadd.f32 %v1042, %v1012
          %v1044 = vadd.f32 %v1043, %v1013
          %v1045 = vadd.f32 %v1044, %v1014
          %v1046 = vadd.f32 %v1045, %v1015
          %v1047 = vadd.f32 %v1046, %v1016
          %v1048 = vadd.f32 %v1047, %v1017
          %v1049 = vadd.f32 %v1048, %v1018
          %v1050 = vadd.f32 %v1049, %v1019
          %v1051 = vadd.f32 %v1050, %v1020
          %v1052 = vadd.f32 %v1051, %v1021
          %v1053 = vadd.f32 %v1052, %v1022
          %v1054 = vadd.f32 %v1053, %v1023
          %v1055 = vadd.f32 %v1054, %v1024
          %v1056 = vadd.f32 %v1055, %v1025
          %v1057 = vadd.f32 %v1056, %v1026
          %v1058 = vadd.f32 %v1057, %v1027
          %v1059 = vadd.f32 %v1058, %v1028
          %v1060 = vadd.f32 %v1059, %v1029
          %v1061 = vadd.f32 %v1060, %v1030
          %v1062 = vadd.f32 %v1061, %v1031
          %v1063 = vadd.f32 %v1062, %v1032
          %v1064 = vadd.f32 %v1063, %v1033
          %v1065 = vadd.f32 %v1064, %v1034
          %v1066 = vadd.f32 %v1065, %v1035
          %v1067 = vadd.f32 %v1066, %v1036
          %v1068 = vadd.f32 %v1067, %v1037
          %v1069 = vadd.f32 %v1068, %v1038
          %v1070 = vadd.f32 %v1069, %v1039
          %v1071 = vrot.slane %v1070, 4
          %v1072 = vadd.f32 %v1070, %v1071
          %v1073 = vrot.slane %v1072, 2
          %v1074 = vadd.f32 %v1072, %v1073
          %v1075 = vrot.slane %v1074, 1
          %v1076 = vadd.f32 %v1074, %v1075
          %1077 = vst [vmem:[%s285] sm:$0x1] %v1076
        $region44: #{tpu_custom_call.1} parent=27 // pred_fallthru
          _
        %s1078 = sand.u32 %s111, 1
        %s1079 = scalar_lea.sflag [#allocation5], %s1078
        %s1080 = sand.u32 %s111, 1
        %s1081 = smul.addr %s1080, 128
        %s1082 = scalar_lea.vmem [#allocation8], %s1081
        %s1083 = sand.u32 %s26, 1
        %s1084 = scalar_lea.sflag [#allocation10], %s1083
        %s1085 = sand.u32 %s139, 1
        %s1086 = scalar_lea.vmem [#allocation9], %s1085
        %s1087 = sand.u32 %s26, 1
        %s1088 = scalar_lea.sflag [#allocation10], %s1087
        %s1089 = sand.u32 %s167, 1
        %s1090 = scalar_lea.vmem [#allocation11], %s1089
        // Predicated region
        $region45: #{tpu_custom_call.1} parent=27 // pred_check
          %p1091 = pneg %p121
        $region46: #{tpu_custom_call.1} parent=27 // pred_check_branch
          %1093 = sbr.rel (%p1091) target = $region48
        $region47: #{tpu_custom_call.1} parent=27 // pred_region
          %s1094 = smul.u32 32, %s31
          %s1096 = ssub.s32 2048, 2048
          %1097 = vsyncadd %s1079, %s1096
          %s1098 = sadd.s32 %s32, %s1094
          %s1099 = smul.addr %s1098, 64
          %s1100 = scalar_lea.hbm %s2, %s1099
          %s1101 = sshll.u32 %s1082, 4
          %s1102 = int_to_ptr.vmem [resolvable:$true] %s1101
          %1107 = dma.vmem_to_hbm [thread:$0]  %s1102, 2048, %s1100, %s1079, 64, 64, 4
        $region48: #{tpu_custom_call.1} parent=27 // pred_fallthru
          _
        // Predicated region
        $region49: #{tpu_custom_call.1} parent=27 // pred_check
          %p1108 = pneg %p149
        $region50: #{tpu_custom_call.1} parent=27 // pred_check_branch
          %1110 = sbr.rel (%p1108) target = $region52
        $region51: #{tpu_custom_call.1} parent=27 // pred_region
          %s1112 = ssub.s32 16, 16
          %1113 = vsyncadd %s1084, %s1112
          %s1114 = sadd.s32 %s32, %s31
          %s1115 = smul.addr %s1114, 16
          %s1116 = scalar_lea.hbm %s3, %s1115
          %s1118 = sshll.u32 %s1086, 4
          %s1119 = int_to_ptr.vmem [resolvable:$true] %s1118
          %1121 = dma.vmem_to_hbm [thread:$0]  %s1119, 16, %s1116, %s1084
        $region52: #{tpu_custom_call.1} parent=27 // pred_fallthru
          _
        // Predicated region
        $region53: #{tpu_custom_call.1} parent=27 // pred_check
          %p1122 = pneg %p177
        $region54: #{tpu_custom_call.1} parent=27 // pred_check_branch
          %1124 = sbr.rel (%p1122) target = $region56
        $region55: #{tpu_custom_call.1} parent=27 // pred_region
          %s1126 = ssub.s32 16, 16
          %1127 = vsyncadd %s1088, %s1126
          %s1128 = sadd.s32 %s32, %s31
          %s1129 = smul.addr %s1128, 16
          %s1130 = scalar_lea.hbm %s4, %s1129
          %s1132 = sshll.u32 %s1090, 4
          %s1133 = int_to_ptr.vmem [resolvable:$true] %s1132
          %1135 = dma.vmem_to_hbm [thread:$0]  %s1133, 16, %s1130, %s1088
        $region56: #{tpu_custom_call.1} parent=27 // pred_fallthru
          _
      $region28: #{tpu_custom_call.1} parent=5 // pred_fallthru
        _
      %p1136 = scmp.le.s32.totalorder 2, %s21
      // Predicated region
      $region57: #{tpu_custom_call.1} parent=5 // pred_check
        %p1137 = pneg %p1136
      $region58: #{tpu_custom_call.1} parent=5 // pred_check_branch
        %1139 = sbr.rel (%p1137) target = $region60
      $region59: #{tpu_custom_call.1} parent=5 // pred_region
        %s1140 = ssub.s32 %s21, 2
        // Predicated region
        $region61: #{tpu_custom_call.1} parent=59 // pred_check
          %p1141 = pneg %p127
        $region62: #{tpu_custom_call.1} parent=59 // pred_check_branch
          %1143 = sbr.rel (%p1141) target = $region64
        $region63: #{tpu_custom_call.1} parent=59 // pred_region
          %s1144 = sand.u32 %s112, 1
          %s1145 = scalar_lea.sflag [#allocation5], %s1144
          %s1146 = sand.u32 %s112, 1
          %s1147 = smul.addr %s1146, 128
          %s1148 = scalar_lea.vmem [#allocation8], %s1147
          %1149 = dma.done %s1145, 2048
        $region64: #{tpu_custom_call.1} parent=59 // pred_fallthru
          _
        // Predicated region
        $region65: #{tpu_custom_call.1} parent=59 // pred_check
          %p1150 = pneg %p155
        $region66: #{tpu_custom_call.1} parent=59 // pred_check_branch
          %1152 = sbr.rel (%p1150) target = $region68
        $region67: #{tpu_custom_call.1} parent=59 // pred_region
          %s1153 = sand.u32 %s27, 1
          %s1154 = scalar_lea.sflag [#allocation10], %s1153
          %s1155 = sand.u32 %s140, 1
          %s1156 = scalar_lea.vmem [#allocation9], %s1155
          %1157 = dma.done %s1154, 16
        $region68: #{tpu_custom_call.1} parent=59 // pred_fallthru
          _
        // Predicated region
        $region69: #{tpu_custom_call.1} parent=59 // pred_check
          %p1158 = pneg %p183
        $region70: #{tpu_custom_call.1} parent=59 // pred_check_branch
          %1160 = sbr.rel (%p1158) target = $region72
        $region71: #{tpu_custom_call.1} parent=59 // pred_region
          %s1161 = sand.u32 %s27, 1
          %s1162 = scalar_lea.sflag [#allocation10], %s1161
          %s1163 = sand.u32 %s168, 1
          %s1164 = scalar_lea.vmem [#allocation11], %s1163
          %1165 = dma.done %s1162, 16
        $region72: #{tpu_custom_call.1} parent=59 // pred_fallthru
          _
      $region60: #{tpu_custom_call.1} parent=5 // pred_fallthru
        _
    $region6: #{tpu_custom_call.1} parent=1 // loop_footer
      %s25 = sadd.s32 1, %s21
    $region7: #{tpu_custom_call.1} parent=1 // loop_footer_branch
      %20 = sbr.rel target = $region3
    $region8: #{tpu_custom_call.1} parent=1 // loop_exit
      _
    %1166 = vsyncpa [#allocation4], 1
    %s1167 = scalar_lea.sflag [#allocation4], 1
    %1168 = vsyncpa %s1167, 1
    %1169 = vsyncpa [#allocation7], 1
    %1170 = vsyncpa [#allocation5], 1
    %s1171 = scalar_lea.sflag [#allocation5], 1
    %1172 = vsyncpa %s1171, 1
    %1173 = vsyncpa [#allocation10], 1
    %s1174 = scalar_lea.sflag [#allocation10], 1
    %1175 = vsyncpa %s1174, 1

</llo_original>
